<compile_context>
chip_gen: v7x
topology: tpu7x:2x2x1
jax: 0.10.0
libtpu: 0.0.40
codegen_flags: <defaults>
</compile_context>

<pallas_src>
import functools

import jax
import jax.numpy as jnp
from jax.experimental import pallas as pl
from jax.experimental.pallas import tpu as pltpu


def _decode_kernel(anchors_ref, pred_ref, out_ref, *,
                   stride_w, stride_h, width, thw):
    # anchors_ref: (num_anchors, 2) f32 in SMEM, rows = (w/stride_w, h/stride_h)
    # pred_ref   : (1, 1, bbox_attrs, thw) VMEM tile for (batch b, anchor a)
    # out_ref    : (1, 1, bbox_attrs, thw) VMEM tile (lane-dense output)
    a = pl.program_id(1)
    hw_start = pl.program_id(2) * thw

    p = pred_ref[0, 0]                       # (bbox_attrs, thw) full tile
    attrs = p.shape[0]

    # Full-tile transcendentals: sigmoid used for rows 0,1,4.. ; exp only
    # selected for rows 2,3.  Both land on the EUP slot -> hidden under DMA.
    s = jax.nn.sigmoid(p)
    e = jnp.exp(p)

    row = jax.lax.broadcasted_iota(jnp.int32, (attrs, thw), 0)
    lane = jax.lax.broadcasted_iota(jnp.int32, (attrs, thw), 1)
    # Reference quirk: grid_y is built like grid_x (no transpose), so both
    # equal the column index j = flat_hw % W.
    col = ((hw_start + lane) % width).astype(jnp.float32)

    aw = anchors_ref[a, 0]                   # scaled anchor width  (scalar)
    ah = anchors_ref[a, 1]                   # scaled anchor height (scalar)

    # rows 0,1: (sigmoid + grid) * stride
    box_xy = (s + col) * jnp.where(row == 0, stride_w, stride_h)
    # rows 2,3: (exp * scaled_anchor) * stride   (same association as ref)
    box_wh = (e * jnp.where(row == 2, aw, ah)) * jnp.where(
        row == 2, stride_w, stride_h)

    out = jnp.where(row < 2, box_xy, jnp.where(row < 4, box_wh, s))
    out_ref[0, 0] = out                      # single unmasked lane-dense store


def decode_box(inp, anchors, num_classes, img_size, *, max_lane_tile=4096):
    """JAX/Pallas equivalent of DecodeBox.forward.

    inp: (B, num_classes * (5 + num_classes), H, W) float32, NCHW.
    Returns (B, num_anchors * H * W, 5 + num_classes) float32.
    """
    B, C, H, W = inp.shape
    num_anchors = len(anchors)
    bbox_attrs = 5 + num_classes
    assert C == num_classes * bbox_attrs
    # The reference only runs when num_anchors == num_classes and H == W
    # (otherwise its .view calls fail) -- same constraint here.
    assert num_anchors == num_classes and H == W

    stride_h = float(img_size[1]) / H
    stride_w = float(img_size[0]) / W
    HW = H * W
    N = num_anchors * HW

    # Free reshape (no data movement): channel axis splits into
    # (num_anchors, bbox_attrs); spatial dims merge.
    pred = inp.reshape(B, num_anchors, bbox_attrs, HW).astype(jnp.float32)

    # scale_anchors = anchors / stride; tiny SMEM-resident table.
    anchors_scaled = jnp.asarray(
        [[a[0] / stride_w, a[1] / stride_h] for a in anchors],
        dtype=jnp.float32)

    # Lane tile over H*W: full extent if small (any size OK when it equals the
    # full dim), otherwise a multiple of 128; Pallas masks the ragged last tile.
    thw = HW if HW <= max_lane_tile else max_lane_tile
    n_hw_tiles = pl.cdiv(HW, thw)

    kernel = functools.partial(_decode_kernel, stride_w=stride_w,
                               stride_h=stride_h, width=W, thw=thw)

    out = pl.pallas_call(
        kernel,
        out_shape=jax.ShapeDtypeStruct((B, num_anchors, bbox_attrs, HW),
                                       jnp.float32),
        grid=(B, num_anchors, n_hw_tiles),
        in_specs=[
            # Whole (num_anchors, 2) anchor table in SMEM (no HBM aux slab).
            pl.BlockSpec(memory_space=pltpu.MemorySpace.SMEM),
            pl.BlockSpec((1, 1, bbox_attrs, thw), lambda b, a, t: (b, a, 0, t)),
        ],
        out_specs=pl.BlockSpec((1, 1, bbox_attrs, thw),
                               lambda b, a, t: (b, a, 0, t)),
        compiler_params=pltpu.CompilerParams(
            # All axes independent -> shard across TensorCores (v7x: 2 TCs).
            dimension_semantics=("parallel", "parallel", "parallel"),
            # Tiles are ~attrs*thw*4 bytes each; explicit limit keeps this
            # safe across v5e/v6e (128 MiB) and v7x (64 MiB).
            vmem_limit_bytes=32 * 1024 * 1024),
    )(anchors_scaled, pred)

    # Kernel output is lane-dense (B, A, attrs, HW); the module's contract is
    # (B, N, attrs), so do the single layout transpose outside the kernel.
    return jnp.transpose(out, (0, 1, 3, 2)).reshape(B, N, bbox_attrs)


if __name__ == "__main__":
    key = jax.random.PRNGKey(0)

    # Small deterministic configuration (num_anchors == num_classes required
    # by the reference module's reshapes).
    anchors = [(10.0, 13.0), (16.0, 30.0), (33.0, 23.0)]
    num_classes = 3
    img_size = (64, 64)
    B, H, W = 2, 8, 8
    C = num_classes * (5 + num_classes)            # 24

    x = jax.random.normal(key, (B, C, H, W), dtype=jnp.float32)

    out = decode_box(x, anchors, num_classes, img_size)
    out = jax.block_until_ready(out)

    assert out.shape == (B, num_classes * H * W, 5 + num_classes), out.shape
    assert out.dtype == jnp.float32
    assert bool(jnp.all(jnp.isfinite(out)))
    print("KERNEL_OK")
</pallas_src>

<mosaic_0001>
module attributes {stable_mosaic.version = 11 : i64} {
  func.func @_decode_kernel(%arg0: i32, %arg1: i32, %arg2: i32, %arg3: memref<3x2xf32, #tpu.memory_space<smem>>, %arg4: memref<1x1x8x64xf32, #tpu.memory_space<vmem>>, %arg5: memref<1x1x8x64xf32, #tpu.memory_space<vmem>>) attributes {dimension_semantics = [#tpu.dimension_semantics<parallel>, #tpu.dimension_semantics<parallel>, #tpu.dimension_semantics<parallel>], iteration_bounds = array<i64: 2, 3, 1>, scalar_prefetch = 0 : i64, scratch_operands = 0 : i64, tpu.core_type = #tpu.core_type<tc>, window_params = [{transform_indices = @transform_0, window_bounds = array<i64: 3, 2>}, {transform_indices = @transform_1, window_bounds = array<i64: 1, 1, 8, 64>}, {transform_indices = @transform_2, window_bounds = array<i64: 1, 1, 8, 64>}]} {
    %c64_i32 = arith.constant 64 : i32
    %0 = arith.muli %arg2, %c64_i32 : i32
    %c0 = arith.constant 0 : index
    %c0_0 = arith.constant 0 : index
    %c0_1 = arith.constant 0 : index
    %c0_2 = arith.constant 0 : index
    %1 = vector.load %arg4[%c0, %c0_0, %c0_1, %c0_2] : memref<1x1x8x64xf32, #tpu.memory_space<vmem>>, vector<1x1x8x64xf32>
    %2 = vector.shape_cast %1 : vector<1x1x8x64xf32> to vector<8x64xf32>
    %3 = arith.negf %2 : vector<8x64xf32>
    %4 = math.exp %3 : vector<8x64xf32>
    %cst = arith.constant 1.000000e+00 : f32
    %5 = vector.broadcast %cst : f32 to vector<8x64xf32>
    %6 = arith.addf %5, %4 : vector<8x64xf32>
    %7 = arith.divf %5, %6 : vector<8x64xf32>
    %8 = math.exp %2 : vector<8x64xf32>
    %9 = tpu.iota {dimensions = array<i32: 0>} : vector<8x64xi32>
    %10 = tpu.iota {dimensions = array<i32: 1>} : vector<8x64xi32>
    %11 = vector.broadcast %0 : i32 to vector<8x64xi32>
    %12 = arith.addi %11, %10 : vector<8x64xi32>
    %c8_i32 = arith.constant 8 : i32
    %c0_i32 = arith.constant 0 : i32
    %13 = arith.cmpi eq, %c8_i32, %c0_i32 : i32
    %c1_i32 = arith.constant 1 : i32
    %14 = arith.select %13, %c1_i32, %c8_i32 : i32
    %15 = vector.broadcast %14 : i32 to vector<8x64xi32>
    %16 = arith.remsi %12, %15 : vector<8x64xi32>
    %c0_i32_3 = arith.constant 0 : i32
    %17 = vector.broadcast %c0_i32_3 : i32 to vector<8x64xi32>
    %18 = arith.cmpi ne, %16, %17 : vector<8x64xi32>
    %c0_i32_4 = arith.constant 0 : i32
    %19 = vector.broadcast %c0_i32_4 : i32 to vector<8x64xi32>
    %20 = arith.cmpi slt, %16, %19 : vector<8x64xi32>
    %c0_i32_5 = arith.constant 0 : i32
    %21 = arith.cmpi slt, %14, %c0_i32_5 : i32
    %22 = vector.broadcast %21 : i1 to vector<8x64xi1>
    %23 = vector.broadcast %22 : vector<8x64xi1> to vector<8x64xi1>
    %24 = arith.xori %20, %23 : vector<8x64xi1>
    %25 = arith.andi %24, %18 : vector<8x64xi1>
    %26 = vector.broadcast %14 : i32 to vector<8x64xi32>
    %27 = arith.addi %16, %26 : vector<8x64xi32>
    %28 = arith.select %25, %27, %16 : vector<8x64xi1>, vector<8x64xi32>
    %29 = arith.sitofp %28 : vector<8x64xi32> to vector<8x64xf32>
    %30 = arith.index_cast %arg1 : i32 to index
    %c0_6 = arith.constant 0 : index
    %31 = memref.load %arg3[%30, %c0_6] : memref<3x2xf32, #tpu.memory_space<smem>>
    %32 = arith.index_cast %arg1 : i32 to index
    %c1 = arith.constant 1 : index
    %33 = memref.load %arg3[%32, %c1] : memref<3x2xf32, #tpu.memory_space<smem>>
    %34 = arith.addf %7, %29 : vector<8x64xf32>
    %c0_i32_7 = arith.constant 0 : i32
    %35 = vector.broadcast %c0_i32_7 : i32 to vector<8x64xi32>
    %36 = arith.cmpi eq, %9, %35 : vector<8x64xi32>
    %cst_8 = arith.constant 8.000000e+00 : f32
    %cst_9 = arith.constant 8.000000e+00 : f32
    %37 = vector.broadcast %cst_8 : f32 to vector<8x64xf32>
    %38 = vector.broadcast %cst_9 : f32 to vector<8x64xf32>
    %39 = arith.select %36, %37, %38 : vector<8x64xi1>, vector<8x64xf32>
    %40 = arith.mulf %34, %39 : vector<8x64xf32>
    %c2_i32 = arith.constant 2 : i32
    %41 = vector.broadcast %c2_i32 : i32 to vector<8x64xi32>
    %42 = arith.cmpi eq, %9, %41 : vector<8x64xi32>
    %43 = vector.broadcast %31 : f32 to vector<8x64xf32>
    %44 = vector.broadcast %33 : f32 to vector<8x64xf32>
    %45 = arith.select %42, %43, %44 : vector<8x64xi1>, vector<8x64xf32>
    %46 = arith.mulf %8, %45 : vector<8x64xf32>
    %c2_i32_10 = arith.constant 2 : i32
    %47 = vector.broadcast %c2_i32_10 : i32 to vector<8x64xi32>
    %48 = arith.cmpi eq, %9, %47 : vector<8x64xi32>
    %cst_11 = arith.constant 8.000000e+00 : f32
    %cst_12 = arith.constant 8.000000e+00 : f32
    %49 = vector.broadcast %cst_11 : f32 to vector<8x64xf32>
    %50 = vector.broadcast %cst_12 : f32 to vector<8x64xf32>
    %51 = arith.select %48, %49, %50 : vector<8x64xi1>, vector<8x64xf32>
    %52 = arith.mulf %46, %51 : vector<8x64xf32>
    %c2_i32_13 = arith.constant 2 : i32
    %53 = vector.broadcast %c2_i32_13 : i32 to vector<8x64xi32>
    %54 = arith.cmpi slt, %9, %53 : vector<8x64xi32>
    %c4_i32 = arith.constant 4 : i32
    %55 = vector.broadcast %c4_i32 : i32 to vector<8x64xi32>
    %56 = arith.cmpi slt, %9, %55 : vector<8x64xi32>
    %57 = arith.select %56, %52, %7 : vector<8x64xi1>, vector<8x64xf32>
    %58 = arith.select %54, %40, %57 : vector<8x64xi1>, vector<8x64xf32>
    %c0_14 = arith.constant 0 : index
    %c0_15 = arith.constant 0 : index
    %c0_16 = arith.constant 0 : index
    %c0_17 = arith.constant 0 : index
    %59 = vector.load %arg5[%c0_14, %c0_15, %c0_16, %c0_17] : memref<1x1x8x64xf32, #tpu.memory_space<vmem>>, vector<1x1x8x64xf32>
    %60 = vector.shape_cast %59 : vector<1x1x8x64xf32> to vector<8x64xf32>
    %61 = vector.shape_cast %58 : vector<8x64xf32> to vector<1x1x8x64xf32>
    tpu.vector_store %arg5[%c0_14, %c0_15, %c0_16, %c0_17], %61 {strides = array<i32>} : memref<1x1x8x64xf32, #tpu.memory_space<vmem>>, vector<1x1x8x64xf32>,
    return
  }
  func.func @transform_0(%arg0: i32, %arg1: i32, %arg2: i32) -> (i32, i32) {
    %c0_i32 = arith.constant 0 : i32
    %c0_i32_0 = arith.constant 0 : i32
    %c0_i32_1 = arith.constant 0 : i32
    return %c0_i32, %c0_i32_0 : i32, i32
  }
  func.func @transform_1(%arg0: i32, %arg1: i32, %arg2: i32) -> (i32, i32, i32, i32) {
    %c0_i32 = arith.constant 0 : i32
    %c0_i32_0 = arith.constant 0 : i32
    return %arg0, %arg1, %c0_i32, %arg2 : i32, i32, i32, i32
  }
  func.func @transform_2(%arg0: i32, %arg1: i32, %arg2: i32) -> (i32, i32, i32, i32) {
    %c0_i32 = arith.constant 0 : i32
    %c0_i32_0 = arith.constant 0 : i32
    return %arg0, %arg1, %c0_i32, %arg2 : i32, i32, i32, i32
  }
}

</mosaic_0001>

<llo_original>
// kernel: tpu_custom_call.1
$region0: #{tpu_custom_call.1}
  #allocation0 [shape = 'u32[]', space=smem, size = 0x4, offset = 0x4, fixed_abs, tag = 'smem constant byte address 0x4 - core index']
  #allocation1 [shape = 'u32[144,128]{1,0:T(1,128)}', space=vmem, size = 0x12000, scoped, tag = 'internal scratch']
  %s0 = inlined_call_operand.vmem [shape: f32[3,2], index: 0, kind: input, shape index: {}]
  %s1 = inlined_call_operand.hbm [shape: f32[2,3,8,64], index: 1, kind: input, shape index: {}]
  %s2 = inlined_call_operand.hbm [shape: f32[2,3,8,64], index: 2, kind: output, shape index: {}]
  %s3 = sld [smem:[#allocation0]]
  $region49: #{tpu_custom_call.1} parent=0
    _
  %s5 = ssub.s32 1, %s3
  %s6 = scalar_select 0, %s5, %s3
  $region1: #{tpu_custom_call.1} parent=0
    #allocation2 [shape = 'u8[2048]{0}', space=smem, size = 0x800, scoped, tag = 'input window, operand 0, single buffered']
    #allocation3 [shape = 's32[2]{0}', space=sflag, size = 0x8, scoped, tag = 'scoped memory for tpu_custom_call.1']
    #allocation4 [shape = 's32[2]{0}', space=sflag, size = 0x8, scoped, tag = 'scoped memory for tpu_custom_call.1']
    #allocation5 [shape = 's32[2]{0}', space=sflag, size = 0x8, scoped, tag = 'scoped memory for tpu_custom_call.1']
    #allocation6 [shape = 'u8[8192]{0}', space=vmem, size = 0x2000, scoped, tag = 'input window, operand 1']
    #allocation7 [shape = 'u8[8192]{0}', space=vmem, size = 0x2000, scoped, tag = 'output window, operand 0']
    %7 = vsyncpa [#allocation5], 0
    %8 = vsyncpa [#allocation3], 0
    %s9 = scalar_lea.sflag [#allocation3], 1
    %10 = vsyncpa %s9, 0
    %11 = vsyncpa [#allocation4], 0
    %s12 = scalar_lea.sflag [#allocation4], 1
    %13 = vsyncpa %s12, 0
    loop: start=0, step=1, limit=8
    $region2: #{tpu_custom_call.1} parent=1 // loop_pre_header
      _
    $region3: #{tpu_custom_call.1} parent=1 // loop_header
      %s15 = sphi 0, %s19
      %p16 = scmp.ge.s32.totalorder %s15, 8
      %s22 = sphi 0, %s41
      %s23 = sphi 0, %s37
      %s24 = sphi 0, %s33
      %s25 = sphi 0, %s22
      %s26 = sphi 0, %s23
      %s27 = sphi 0, %s24
      %s28 = sphi 0, %s25
      %s29 = sphi 0, %s26
      %s30 = sphi 0, %s27
      %s42 = sphi 0, %s42
      %s44 = sphi 0, %s42
      %s45 = sphi 0, %s44
      %s59 = sphi 0, %s45
      %s69 = sphi 0, %s71
      %s72 = sphi 0, %s69
      %s73 = sphi 0, %s72
      %s89 = sphi 0, %s73
      %s99 = sphi 0, %s101
      %s102 = sphi 0, %s99
      %s103 = sphi 0, %s102
      %s119 = sphi 0, %s103
    $region4: #{tpu_custom_call.1} parent=1 // loop_header_branch
      %18 = sbr.rel (%p16) target = $region8
    $region5: #{tpu_custom_call.1} parent=1 // loop_body
      %s20 = ssub.s32 %s15, 1
      %s21 = ssub.s32 %s15, 2
      %s31 = sadd.s32 1, %s24
      %p32 = scmp.ge.s32.totalorder %s31, 1
      %s33 = scalar_select %p32, 0, %s31
      %s34 = sadd.s32 1, %s23
      %s35 = scalar_select %p32, %s34, %s23
      %p36 = scmp.ge.s32.totalorder %s35, 3
      %s37 = scalar_select %p36, 0, %s35
      %s38 = sadd.s32 1, %s22
      %s39 = scalar_select %p36, %s38, %s22
      %p40 = scmp.ge.s32.totalorder %s39, 2
      %s41 = scalar_select %p40, 0, %s39
      %s43 = sadd.s32 %s42, 1
      %p46 = scmp.eq.s32.totalorder %s15, 5
      %p47 = scmp.ne.s32.totalorder %s42, %s44
      %p48 = scmp.eq.s32.totalorder %s15, 0
      %p49 = por %p47, %p48
      %p50 = scmp.ne.s32.totalorder %s42, %s44
      %p51 = scmp.eq.s32.totalorder %s20, 5
      %p52 = por %p50, %p51
      %p53 = scmp.ne.s32.totalorder %s44, %s45
      %p54 = scmp.eq.s32.totalorder %s20, 0
      %p55 = por %p53, %p54
      %p56 = scmp.ne.s32.totalorder %s44, %s45
      %p57 = scmp.eq.s32.totalorder %s21, 5
      %p58 = por %p56, %p57
      %p60 = scmp.ne.s32.totalorder %s45, %s59
      %p61 = scmp.eq.s32.totalorder %s21, 0
      %p62 = por %p60, %p61
      %s63 = ssub.s32 %s22, %s41
      %s64 = ssub.s32 %s23, %s37
      %s65 = sor.u32 %s63, %s64
      %s66 = ssub.s32 %s24, %s33
      %s67 = sor.u32 %s65, %s66
      %p68 = scmp.eq.s32.totalorder %s67, 0
      %s70 = sadd.s32 %s69, 1
      %s71 = scalar_select %p68, %s69, %s70
      %p74 = pneg %p68
      %p75 = scmp.eq.s32.totalorder %s15, 5
      %p76 = por %p74, %p75
      %p77 = scmp.ne.s32.totalorder %s69, %s72
      %p78 = scmp.eq.s32.totalorder %s15, 0
      %p79 = por %p77, %p78
      %p80 = scmp.ne.s32.totalorder %s69, %s72
      %p81 = scmp.eq.s32.totalorder %s20, 5
      %p82 = por %p80, %p81
      %p83 = scmp.ne.s32.totalorder %s72, %s73
      %p84 = scmp.eq.s32.totalorder %s20, 0
      %p85 = por %p83, %p84
      %p86 = scmp.ne.s32.totalorder %s72, %s73
      %p87 = scmp.eq.s32.totalorder %s21, 5
      %p88 = por %p86, %p87
      %p90 = scmp.ne.s32.totalorder %s73, %s89
      %p91 = scmp.eq.s32.totalorder %s21, 0
      %p92 = por %p90, %p91
      %s93 = ssub.s32 %s22, %s41
      %s94 = ssub.s32 %s23, %s37
      %s95 = sor.u32 %s93, %s94
      %s96 = ssub.s32 %s24, %s33
      %s97 = sor.u32 %s95, %s96
      %p98 = scmp.eq.s32.totalorder %s97, 0
      %s100 = sadd.s32 %s99, 1
      %s101 = scalar_select %p98, %s99, %s100
      %p104 = pneg %p98
      %p105 = scmp.eq.s32.totalorder %s15, 5
      %p106 = por %p104, %p105
      %p107 = scmp.ne.s32.totalorder %s99, %s102
      %p108 = scmp.eq.s32.totalorder %s15, 0
      %p109 = por %p107, %p108
      %p110 = scmp.ne.s32.totalorder %s99, %s102
      %p111 = scmp.eq.s32.totalorder %s20, 5
      %p112 = por %p110, %p111
      %p113 = scmp.ne.s32.totalorder %s102, %s103
      %p114 = scmp.eq.s32.totalorder %s20, 0
      %p115 = por %p113, %p114
      %p116 = scmp.ne.s32.totalorder %s102, %s103
      %p117 = scmp.eq.s32.totalorder %s21, 5
      %p118 = por %p116, %p117
      %p120 = scmp.ne.s32.totalorder %s103, %s119
      %p121 = scmp.eq.s32.totalorder %s21, 0
      %p122 = por %p120, %p121
      %p123 = scmp.le.s32.totalorder 1, %s15
      %p124 = scmp.lt.s32.totalorder %s15, 7
      %p125 = pnand %p123, %p124
      %p126 = pneg %p125
      // Predicated region
      $region9: #{tpu_custom_call.1} parent=5 // pred_check
        _
      $region10: #{tpu_custom_call.1} parent=5 // pred_check_branch
        %128 = sbr.rel (%p125) target = $region12
      $region11: #{tpu_custom_call.1} parent=5 // pred_region
        %s129 = ssub.s32 %s15, 1
        // Predicated region
        $region13: #{tpu_custom_call.1} parent=11 // pred_check
          %p130 = pneg %p55
        $region14: #{tpu_custom_call.1} parent=11 // pred_check_branch
          %132 = sbr.rel (%p130) target = $region16
        $region15: #{tpu_custom_call.1} parent=11 // pred_region
          %s134 = ssub.s32 64, 64
          %135 = vsyncadd [#allocation5], %s134
          %s137 = sshll.u32 %s0, 4
          %s138 = int_to_ptr.vmem [resolvable:$true] %s137
          %140 = dma.vmem_to_smem %s138, 64, [#allocation2], [#allocation5]
        $region16: #{tpu_custom_call.1} parent=11 // pred_fallthru
          _
      $region12: #{tpu_custom_call.1} parent=5 // pred_fallthru
        _
      %p141 = scmp.lt.s32.totalorder %s15, 6
      // Predicated region
      $region17: #{tpu_custom_call.1} parent=5 // pred_check
        %p142 = pneg %p141
      $region18: #{tpu_custom_call.1} parent=5 // pred_check_branch
        %144 = sbr.rel (%p142) target = $region20
      $region19: #{tpu_custom_call.1} parent=5 // pred_region
        // Predicated region
        $region21: #{tpu_custom_call.1} parent=19 // pred_check
          %p145 = pneg %p79
        $region22: #{tpu_custom_call.1} parent=19 // pred_check_branch
          %147 = sbr.rel (%p145) target = $region24
        $region23: #{tpu_custom_call.1} parent=19 // pred_region
          %s148 = sand.u32 %s69, 1
          %s149 = scalar_lea.sflag [#allocation3], %s148
          %s150 = sand.u32 %s69, 1
          %s151 = smul.addr %s150, 8
          %s152 = scalar_lea.vmem [#allocation6], %s151
          %s154 = ssub.s32 128, 128
          %155 = vsyncadd %s149, %s154
          %s156 = sadd.s32 %s24, %s23
          %s157 = smul.addr %s22, 3
          %s158 = sadd.s32 %s156, %s157
          %s159 = smul.addr %s158, 128
          %s160 = scalar_lea.hbm %s1, %s159
          %s162 = sshll.u32 %s152, 4
          %s163 = int_to_ptr.vmem [resolvable:$true] %s162
          %165 = dma.hbm_to_vmem [thread:$0]  %s160, 128, %s163, %s149
        $region24: #{tpu_custom_call.1} parent=19 // pred_fallthru
          _
      $region20: #{tpu_custom_call.1} parent=5 // pred_fallthru
        _
      %p166 = scmp.le.s32.totalorder 1, %s15
      %p167 = scmp.lt.s32.totalorder %s15, 7
      %p168 = pnand %p166, %p167
      %p169 = pneg %p168
      // Predicated region
      $region25: #{tpu_custom_call.1} parent=5 // pred_check
        _
      $region26: #{tpu_custom_call.1} parent=5 // pred_check_branch
        %171 = sbr.rel (%p168) target = $region28
      $region27: #{tpu_custom_call.1} parent=5 // pred_region
        %s172 = ssub.s32 %s15, 1
        // Predicated region
        $region29: #{tpu_custom_call.1} parent=27 // pred_check
          %p173 = pneg %p55
        $region30: #{tpu_custom_call.1} parent=27 // pred_check_branch
          %175 = sbr.rel (%p173) target = $region32
        $region31: #{tpu_custom_call.1} parent=27 // pred_region
          %176 = dma.done [#allocation5], 64
        $region32: #{tpu_custom_call.1} parent=27 // pred_fallthru
          _
        %s177 = sand.u32 %s72, 1
        %s178 = scalar_lea.sflag [#allocation3], %s177
        %s179 = sand.u32 %s72, 1
        %s180 = smul.addr %s179, 8
        %s181 = scalar_lea.vmem [#allocation6], %s180
        // Predicated region
        $region33: #{tpu_custom_call.1} parent=27 // pred_check
          %p182 = pneg %p85
        $region34: #{tpu_custom_call.1} parent=27 // pred_check_branch
          %184 = sbr.rel (%p182) target = $region36
        $region35: #{tpu_custom_call.1} parent=27 // pred_region
          %185 = dma.done %s178, 128
        $region36: #{tpu_custom_call.1} parent=27 // pred_fallthru
          _
        %186 = sfence
        %p187 = pneg %p55
        %p188 = pneg %p52
        %s189 = sand.u32 %s72, 1
        %s190 = scalar_lea.sflag [#allocation3], %s189
        %s191 = sand.u32 %s72, 1
        %s192 = smul.addr %s191, 8
        %s193 = scalar_lea.vmem [#allocation6], %s192
        %p194 = pneg %p85
        %p195 = pneg %p82
        %p196 = pneg %p115
        %p197 = pneg %p112
        %s198 = sand.u32 %s102, 1
        %s199 = scalar_lea.sflag [#allocation4], %s198
        %s200 = sand.u32 %s102, 1
        %s201 = smul.addr %s200, 8
        %s202 = scalar_lea.vmem [#allocation7], %s201
        %s203 = smul.u32 %s27, 64
        %v204 = vld [vmem:[%s181] sm:$0xff]
        %v205 = vxor.u32 %v204, 2147483648
        %v206 = vmul.f32 %v205, 1.442695
        %v207 = vpow.pop %v206
        %v208 = vadd.f32 %v207, 1.0
        %v209 = vrcp.pop %v208
        %v210 = vmul.f32 1.0, %v209
        %v211 = vmul.f32 %v204, 1.442695
        %v212 = vpow.pop %v211
        %v213 = vlaneseq
        %v214 = vshrl.u32 %v213, 7
        %v215 = vlaneseq
        %v216 = vand.u32 %v215, 127
        %v217 = vstv %s203
        %v218 = vadd.s32 %v217, %v216
        %vm219 = vcmp.lt.s32.totalorder %v218, 0
        %v220 = vsub.s32 0, %v218
        %v221 = vsel %vm219, %v220, %v218
        %v222 = vshrl.u32 %v221, 3
        %v223 = vand.u32 %v221, 7
        %v224 = vsub.s32 0, %v223
        %v225 = vsel %vm219, %v224, %v223
        %vm226 = vcmp.ne.s32.totalorder %v225, 0
        %vm227 = vcmp.lt.s32.totalorder %v225, 0
        %vm228 = vmand %vm227, %vm226
        %v229 = vadd.s32 %v225, 8
        %v230 = vsel %vm228, %v229, %v225
        %v231 = vcvt.s32.f32 %v230
        %s232 = smul.u32 %s26, 128
        %s233 = sld [smem:[#allocation2 + %s232]]
        %s234 = sadd.s32 %s232, 1
        %s235 = sld [smem:[#allocation2 + %s234]]
        %v236 = vadd.f32 %v210, %v231
        %v237 = vmul.f32 %v236, 8.0
        %vm238 = vcmp.eq.s32.totalorder %v214, 2
        %v239 = vstv %s233
        %v240 = vstv %s235
        %v241 = vsel %vm238, %v239, %v240
        %v242 = vmul.f32 %v212, %v241
        %v243 = vmul.f32 %v242, 8.0
        %vm244 = vcmp.lt.s32.totalorder %v214, 2
        %vm245 = vcmp.lt.s32.totalorder %v214, 4
        %v246 = vsel %vm245, %v243, %v210
        %v247 = vsel %vm244, %v237, %v246
        %vm248 = vcmask 523264
        %249 = vst.msk [vmem:[%s202] sm:$0xff] %vm248, %v247
        %s250 = sand.u32 %s102, 1
        %s251 = scalar_lea.sflag [#allocation4], %s250
        %s252 = sand.u32 %s102, 1
        %s253 = smul.addr %s252, 8
        %s254 = scalar_lea.vmem [#allocation7], %s253
        // Predicated region
        $region37: #{tpu_custom_call.1} parent=27 // pred_check
          %p255 = pneg %p112
        $region38: #{tpu_custom_call.1} parent=27 // pred_check_branch
          %257 = sbr.rel (%p255) target = $region40
        $region39: #{tpu_custom_call.1} parent=27 // pred_region
          %s259 = ssub.s32 128, 128
          %260 = vsyncadd %s251, %s259
          %s261 = sadd.s32 %s27, %s26
          %s262 = smul.addr %s25, 3
          %s263 = sadd.s32 %s261, %s262
          %s264 = smul.addr %s263, 128
          %s265 = scalar_lea.hbm %s2, %s264
          %s267 = sshll.u32 %s254, 4
          %s268 = int_to_ptr.vmem [resolvable:$true] %s267
          %270 = dma.vmem_to_hbm [thread:$0]  %s268, 128, %s265, %s251
        $region40: #{tpu_custom_call.1} parent=27 // pred_fallthru
          _
      $region28: #{tpu_custom_call.1} parent=5 // pred_fallthru
        _
      %p271 = scmp.le.s32.totalorder 2, %s15
      // Predicated region
      $region41: #{tpu_custom_call.1} parent=5 // pred_check
        %p272 = pneg %p271
      $region42: #{tpu_custom_call.1} parent=5 // pred_check_branch
        %274 = sbr.rel (%p272) target = $region44
      $region43: #{tpu_custom_call.1} parent=5 // pred_region
        %s275 = ssub.s32 %s15, 2
        // Predicated region
        $region45: #{tpu_custom_call.1} parent=43 // pred_check
          %p276 = pneg %p118
        $region46: #{tpu_custom_call.1} parent=43 // pred_check_branch
          %278 = sbr.rel (%p276) target = $region48
        $region47: #{tpu_custom_call.1} parent=43 // pred_region
          %s279 = sand.u32 %s103, 1
          %s280 = scalar_lea.sflag [#allocation4], %s279
          %s281 = sand.u32 %s103, 1
          %s282 = smul.addr %s281, 8
          %s283 = scalar_lea.vmem [#allocation7], %s282
          %284 = dma.done %s280, 128
        $region48: #{tpu_custom_call.1} parent=43 // pred_fallthru
          _
      $region44: #{tpu_custom_call.1} parent=5 // pred_fallthru
        _
    $region6: #{tpu_custom_call.1} parent=1 // loop_footer
      %s19 = sadd.s32 1, %s15
    $region7: #{tpu_custom_call.1} parent=1 // loop_footer_branch
      %14 = sbr.rel target = $region3
    $region8: #{tpu_custom_call.1} parent=1 // loop_exit
      _
    %285 = vsyncpa [#allocation3], 1
    %s286 = scalar_lea.sflag [#allocation3], 1
    %287 = vsyncpa %s286, 1
    %288 = vsyncpa [#allocation4], 1
    %s289 = scalar_lea.sflag [#allocation4], 1
    %290 = vsyncpa %s289, 1
    %291 = vsyncpa [#allocation5], 1
    %s292 = scalar_lea.sflag [#allocation5], 1
    %293 = vsyncpa %s292, 1

</llo_original>
